<compile_context>
chip_gen: v7x
topology: tpu7x:2x2x1
jax: 0.10.0
libtpu: 0.0.40
codegen_flags: <defaults>
</compile_context>

<pallas_src>
import functools

import jax
import jax.numpy as jnp
from jax.experimental import pallas as pl
from jax.experimental.pallas import tpu as pltpu


def mlp_kernel(x_ref, wc_ref, bc_ref, o_ref):
    # x_ref : (TM, K)     fp32  (cast to bf16 here -> no extra HBM pass)
    # wc_ref: (K, C_pad)  bf16  (resident composed weight, constant index_map)
    # bc_ref: (1, C_pad)  fp32  (resident composed bias)
    # o_ref : (TM, C_pad) fp32  (lane-dense, C_pad = 128)
    x = x_ref[...].astype(jnp.bfloat16)
    acc = jnp.dot(x, wc_ref[...], preferred_element_type=jnp.float32)
    o_ref[...] = (acc + bc_ref[...]).astype(o_ref.dtype)


def _round_up(x, m):
    return (x + m - 1) // m * m


def pick_tm(batch, max_tm=512):
    """Largest batch tile <= max_tm that still gives a grid of >= 2 steps
    (keeps both TensorCores busy on v7x); floor of 128."""
    tm = 128
    while tm * 2 <= max_tm and batch >= 2 * (tm * 2):
        tm *= 2
    return tm


def prepare_fused_params(params, num_classes):
    """Compose the 4 activation-free linear layers into one (done ONCE).

    Composition is done in fp32 (exactly matches the module's math up to fp32
    rounding); only the final composed weight is cast to bf16 for the MXU.
    """
    wc = params["w1"] @ params["w2"] @ params["w3"] @ params["w4"]          # (K, C) fp32
    bc = ((params["b1"] @ params["w2"] + params["b2"]) @ params["w3"]
          + params["b3"]) @ params["w4"] + params["b4"]                     # (1, C) fp32
    c_pad = _round_up(num_classes, 128)
    wc = jnp.pad(wc, ((0, 0), (0, c_pad - num_classes))).astype(jnp.bfloat16)
    bc = jnp.pad(bc, ((0, 0), (0, c_pad - num_classes))).astype(jnp.float32)
    return {"wc": wc, "bc": bc}


@functools.partial(jax.jit, static_argnames=("img_size", "num_classes", "tm"))
def my_mlp_forward(x, fused, *, img_size, num_classes, tm=128):
    """Pallas implementation of myMLP.forward.

    x: (B, C, H, W) float32 (NCHW), reshaped to (B, img_size*img_size).
    fused: dict with the pre-composed "wc" (K, C_pad) bf16 and "bc" (1, C_pad) fp32.
    """
    b = x.shape[0]
    k = img_size * img_size
    x2d = jnp.reshape(x, (b, k)).astype(jnp.float32)   # reshape is layout-free

    b_pad = _round_up(b, tm)
    if b_pad != b:
        x2d = jnp.pad(x2d, ((0, b_pad - b), (0, 0)))   # batch padding only

    wc = fused["wc"]
    bc = fused["bc"]
    c_pad = wc.shape[1]

    in_specs = [
        # x tile: pipelined over the batch grid. Last dim 784 is the full
        # array extent, so it need not be a multiple of 128.
        pl.BlockSpec((tm, k), lambda i: (i, 0)),
        # Composed weight / bias: constant index_map -> resident in VMEM.
        pl.BlockSpec(wc.shape, lambda i: (0, 0)),
        pl.BlockSpec(bc.shape, lambda i: (0, 0)),
    ]
    out_spec = pl.BlockSpec((tm, c_pad), lambda i: (i, 0))

    out = pl.pallas_call(
        mlp_kernel,
        out_shape=jax.ShapeDtypeStruct((b_pad, c_pad), jnp.float32),
        grid=(b_pad // tm,),
        in_specs=in_specs,
        out_specs=out_spec,
        compiler_params=pltpu.CompilerParams(
            dimension_semantics=("parallel",),   # batch axis -> both TCs on v7x
            vmem_limit_bytes=16 << 20,           # tiny working set; keep modest
        ),
    )(x2d, wc, bc)

    # Strip batch padding and the lane-padding of the class dimension.
    return out[:b, :num_classes]


def init_params(key, img_size, hidden_size, num_classes):
    """Deterministic init mimicking nn.Linear's U(-1/sqrt(fan_in), 1/sqrt(fan_in))."""
    dims = [(img_size * img_size, hidden_size),
            (hidden_size, hidden_size),
            (hidden_size, hidden_size),
            (hidden_size, num_classes)]
    params = {}
    for i, (fan_in, fan_out) in enumerate(dims, start=1):
        key, kw, kb = jax.random.split(key, 3)
        bound = 1.0 / jnp.sqrt(jnp.float32(fan_in))
        params[f"w{i}"] = jax.random.uniform(
            kw, (fan_in, fan_out), jnp.float32, -bound, bound)
        params[f"b{i}"] = jax.random.uniform(
            kb, (1, fan_out), jnp.float32, -bound, bound)
    return params


def reference_forward(x, params, img_size):
    b = x.shape[0]
    h = jnp.reshape(x, (b, img_size * img_size)).astype(jnp.float32)
    h = h @ params["w1"] + params["b1"]
    h = h @ params["w2"] + params["b2"]
    h = h @ params["w3"] + params["b3"]
    h = h @ params["w4"] + params["b4"]
    return h


if __name__ == "__main__":
    # MNIST-like shapes consistent with the module (img_size=28, hidden=500,
    # 10 classes).  batch=256 -> TM=128 -> a 2-step batch-parallel grid, which
    # keeps both TensorCores busy on v7x.
    batch = 256
    img_size = 28
    hidden_size = 500
    num_classes = 10

    key = jax.random.PRNGKey(0)
    key, kx = jax.random.split(key)
    x = jax.random.normal(kx, (batch, 1, img_size, img_size), jnp.float32)

    params = init_params(key, img_size, hidden_size, num_classes)
    fused = prepare_fused_params(params, num_classes)   # once, outside forward
    fused = jax.tree_util.tree_map(jax.block_until_ready, fused)

    tm = pick_tm(batch)
    out = my_mlp_forward(x, fused, img_size=img_size,
                         num_classes=num_classes, tm=tm)
    out = jax.block_until_ready(out)

    ref = reference_forward(x, params, img_size)
    assert out.shape == (batch, num_classes), out.shape
    # Single bf16 matmul (fp32 accumulation) against the fp32 4-layer
    # reference: outputs are O(0.1-0.5), errors are O(1e-3); 2e-2 tolerance is
    # comfortable.
    assert jnp.allclose(out, ref, atol=2e-2, rtol=2e-2), "mismatch vs reference"

    print("KERNEL_OK")
</pallas_src>

<mosaic_0001>
module attributes {stable_mosaic.version = 11 : i64} {
  func.func @mlp_kernel(%arg0: i32, %arg1: memref<128x784xf32, #tpu.memory_space<vmem>>, %arg2: memref<784x128xbf16, #tpu.memory_space<vmem>>, %arg3: memref<1x128xf32, #tpu.memory_space<vmem>>, %arg4: memref<128x128xf32, #tpu.memory_space<vmem>>) attributes {dimension_semantics = [#tpu.dimension_semantics<parallel>], iteration_bounds = array<i64: 2>, scalar_prefetch = 0 : i64, scratch_operands = 0 : i64, tpu.core_type = #tpu.core_type<tc>, window_params = [{transform_indices = @transform_0, window_bounds = array<i64: 128, 784>}, {pipeline_mode = #tpu.pipeline_mode<synchronous>, transform_indices = @transform_1, window_bounds = array<i64: 784, 128>}, {pipeline_mode = #tpu.pipeline_mode<synchronous>, transform_indices = @transform_2, window_bounds = array<i64: 1, 128>}, {transform_indices = @transform_3, window_bounds = array<i64: 128, 128>}]} {
    %c0 = arith.constant 0 : index
    %c0_0 = arith.constant 0 : index
    %0 = vector.load %arg1[%c0, %c0_0] : memref<128x784xf32, #tpu.memory_space<vmem>>, vector<128x784xf32>
    %1 = arith.truncf %0 : vector<128x784xf32> to vector<128x784xbf16>
    %c0_1 = arith.constant 0 : index
    %c0_2 = arith.constant 0 : index
    %2 = vector.load %arg2[%c0_1, %c0_2] : memref<784x128xbf16, #tpu.memory_space<vmem>>, vector<784x128xbf16>
    %cst = arith.constant dense<0.000000e+00> : vector<128x128xf32>
    %3 = tpu.matmul %1, %2, %cst {dimension_numbers = #tpu.dot_dimension_numbers<[1], [0], [0], [1], [0, 0, 1, 1], [], []>} : vector<128x784xbf16>, vector<784x128xbf16>, vector<128x128xf32> -> vector<128x128xf32>
    %c0_3 = arith.constant 0 : index
    %c0_4 = arith.constant 0 : index
    %4 = vector.load %arg3[%c0_3, %c0_4] : memref<1x128xf32, #tpu.memory_space<vmem>>, vector<1x128xf32>
    %5 = vector.broadcast %4 : vector<1x128xf32> to vector<128x128xf32>
    %6 = arith.addf %3, %5 : vector<128x128xf32>
    %c0_5 = arith.constant 0 : index
    %c0_6 = arith.constant 0 : index
    %7 = vector.load %arg4[%c0_5, %c0_6] : memref<128x128xf32, #tpu.memory_space<vmem>>, vector<128x128xf32>
    tpu.vector_store %arg4[%c0_5, %c0_6], %6 {strides = array<i32>} : memref<128x128xf32, #tpu.memory_space<vmem>>, vector<128x128xf32>,
    return
  }
  func.func @transform_0(%arg0: i32) -> (i32, i32) {
    %c0_i32 = arith.constant 0 : i32
    %c0_i32_0 = arith.constant 0 : i32
    return %arg0, %c0_i32 : i32, i32
  }
  func.func @transform_1(%arg0: i32) -> (i32, i32) {
    %c0_i32 = arith.constant 0 : i32
    %c0_i32_0 = arith.constant 0 : i32
    %c0_i32_1 = arith.constant 0 : i32
    return %c0_i32, %c0_i32_0 : i32, i32
  }
  func.func @transform_2(%arg0: i32) -> (i32, i32) {
    %c0_i32 = arith.constant 0 : i32
    %c0_i32_0 = arith.constant 0 : i32
    %c0_i32_1 = arith.constant 0 : i32
    return %c0_i32, %c0_i32_0 : i32, i32
  }
  func.func @transform_3(%arg0: i32) -> (i32, i32) {
    %c0_i32 = arith.constant 0 : i32
    %c0_i32_0 = arith.constant 0 : i32
    return %arg0, %c0_i32 : i32, i32
  }
}

</mosaic_0001>

<llo_original>
// kernel: my_mlp_forward.1
$region0: #{my_mlp_forward.1}
  #allocation0 [shape = 'u32[]', space=smem, size = 0x4, offset = 0x4, fixed_abs, tag = 'smem constant byte address 0x4 - core index']
  #allocation1 [shape = 'u32[144,128]{1,0:T(1,128)}', space=vmem, size = 0x12000, scoped, tag = 'internal scratch']
  %s0 = inlined_call_operand.vmem [shape: f32[256,784], index: 0, kind: input, shape index: {}]
  %s1 = inlined_call_operand.vmem [shape: bf16[784,128], index: 1, kind: input, shape index: {}]
  %s2 = inlined_call_operand.vmem [shape: f32[1,128], index: 2, kind: input, shape index: {}]
  %s3 = inlined_call_operand.vmem [shape: f32[256,128], index: 3, kind: output, shape index: {}]
  %s4 = sld [smem:[#allocation0]]
  $region45: #{my_mlp_forward.1} parent=0
    _
  %s6 = ssub.s32 1, %s4
  %s7 = scalar_select 0, %s6, %s4
  loop: start=0, step=1, limit=4
  $region2: #{my_mlp_forward.1} parent=0 // loop_pre_header
    _
  $region3: #{my_mlp_forward.1} parent=0 // loop_header
    %s9 = sphi 0, %s13
    %p10 = scmp.ge.s32.totalorder %s9, 4
    %s19 = sphi 0, %s21
    %s22 = sphi 0, %s19
    %s23 = sphi 0, %s22
    %s39 = sphi 0, %s23
    %s43 = sphi 0, %s43
    %s45 = sphi 0, %s43
    %s46 = sphi 0, %s45
    %s60 = sphi 0, %s46
    %s64 = sphi 0, %s64
    %s66 = sphi 0, %s64
    %s67 = sphi 0, %s66
    %s81 = sphi 0, %s67
    %s87 = sphi 0, %s89
    %s90 = sphi 0, %s87
    %s91 = sphi 0, %s90
    %s107 = sphi 0, %s91
  $region4: #{my_mlp_forward.1} parent=0 // loop_header_branch
    %12 = sbr.rel (%p10) target = $region8
  $region5: #{my_mlp_forward.1} parent=0 // loop_body
    %s14 = ssub.s32 %s9, 1
    %s15 = ssub.s32 %s9, 2
    %s16 = sadd.s32 %s9, 1
    %s17 = ssub.s32 %s9, %s16
    %p18 = scmp.eq.s32.totalorder %s17, 0
    %s20 = sadd.s32 %s19, 1
    %s21 = scalar_select %p18, %s19, %s20
    %p24 = pneg %p18
    %p25 = scmp.eq.s32.totalorder %s9, 1
    %p26 = por %p24, %p25
    %p27 = scmp.ne.s32.totalorder %s19, %s22
    %p28 = scmp.eq.s32.totalorder %s9, 0
    %p29 = por %p27, %p28
    %p30 = scmp.ne.s32.totalorder %s19, %s22
    %p31 = scmp.eq.s32.totalorder %s14, 1
    %p32 = por %p30, %p31
    %p33 = scmp.ne.s32.totalorder %s22, %s23
    %p34 = scmp.eq.s32.totalorder %s14, 0
    %p35 = por %p33, %p34
    %p36 = scmp.ne.s32.totalorder %s22, %s23
    %p37 = scmp.eq.s32.totalorder %s15, 1
    %p38 = por %p36, %p37
    %p40 = scmp.ne.s32.totalorder %s23, %s39
    %p41 = scmp.eq.s32.totalorder %s15, 0
    %p42 = por %p40, %p41
    %s44 = sadd.s32 %s43, 1
    %p47 = scmp.eq.s32.totalorder %s9, 1
    %p48 = scmp.ne.s32.totalorder %s43, %s45
    %p49 = scmp.eq.s32.totalorder %s9, 0
    %p50 = por %p48, %p49
    %p51 = scmp.ne.s32.totalorder %s43, %s45
    %p52 = scmp.eq.s32.totalorder %s14, 1
    %p53 = por %p51, %p52
    %p54 = scmp.ne.s32.totalorder %s45, %s46
    %p55 = scmp.eq.s32.totalorder %s14, 0
    %p56 = por %p54, %p55
    %p57 = scmp.ne.s32.totalorder %s45, %s46
    %p58 = scmp.eq.s32.totalorder %s15, 1
    %p59 = por %p57, %p58
    %p61 = scmp.ne.s32.totalorder %s46, %s60
    %p62 = scmp.eq.s32.totalorder %s15, 0
    %p63 = por %p61, %p62
    %s65 = sadd.s32 %s64, 1
    %p68 = scmp.eq.s32.totalorder %s9, 1
    %p69 = scmp.ne.s32.totalorder %s64, %s66
    %p70 = scmp.eq.s32.totalorder %s9, 0
    %p71 = por %p69, %p70
    %p72 = scmp.ne.s32.totalorder %s64, %s66
    %p73 = scmp.eq.s32.totalorder %s14, 1
    %p74 = por %p72, %p73
    %p75 = scmp.ne.s32.totalorder %s66, %s67
    %p76 = scmp.eq.s32.totalorder %s14, 0
    %p77 = por %p75, %p76
    %p78 = scmp.ne.s32.totalorder %s66, %s67
    %p79 = scmp.eq.s32.totalorder %s15, 1
    %p80 = por %p78, %p79
    %p82 = scmp.ne.s32.totalorder %s67, %s81
    %p83 = scmp.eq.s32.totalorder %s15, 0
    %p84 = por %p82, %p83
    %s85 = ssub.s32 %s9, %s16
    %p86 = scmp.eq.s32.totalorder %s85, 0
    %s88 = sadd.s32 %s87, 1
    %s89 = scalar_select %p86, %s87, %s88
    %p92 = pneg %p86
    %p93 = scmp.eq.s32.totalorder %s9, 1
    %p94 = por %p92, %p93
    %p95 = scmp.ne.s32.totalorder %s87, %s90
    %p96 = scmp.eq.s32.totalorder %s9, 0
    %p97 = por %p95, %p96
    %p98 = scmp.ne.s32.totalorder %s87, %s90
    %p99 = scmp.eq.s32.totalorder %s14, 1
    %p100 = por %p98, %p99
    %p101 = scmp.ne.s32.totalorder %s90, %s91
    %p102 = scmp.eq.s32.totalorder %s14, 0
    %p103 = por %p101, %p102
    %p104 = scmp.ne.s32.totalorder %s90, %s91
    %p105 = scmp.eq.s32.totalorder %s15, 1
    %p106 = por %p104, %p105
    %p108 = scmp.ne.s32.totalorder %s91, %s107
    %p109 = scmp.eq.s32.totalorder %s15, 0
    %p110 = por %p108, %p109
    %p111 = scmp.le.s32.totalorder 1, %s9
    %p112 = scmp.lt.s32.totalorder %s9, 3
    %p113 = pnand %p111, %p112
    %p114 = pneg %p113
    // Predicated region
    $region9: #{my_mlp_forward.1} parent=5 // pred_check
      _
    $region10: #{my_mlp_forward.1} parent=5 // pred_check_branch
      %116 = sbr.rel (%p113) target = $region12
    $region11: #{my_mlp_forward.1} parent=5 // pred_region
      %s117 = ssub.s32 %s9, 1
      // Predicated region
      $region13: #{my_mlp_forward.1} parent=11 // pred_check
        %p118 = pneg %p56
      $region14: #{my_mlp_forward.1} parent=11 // pred_check_branch
        %120 = sbr.rel (%p118) target = $region16
      $region15: #{my_mlp_forward.1} parent=11 // pred_region
        _
      $region16: #{my_mlp_forward.1} parent=11 // pred_fallthru
        _
      // Predicated region
      $region17: #{my_mlp_forward.1} parent=11 // pred_check
        %p121 = pneg %p77
      $region18: #{my_mlp_forward.1} parent=11 // pred_check_branch
        %123 = sbr.rel (%p121) target = $region20
      $region19: #{my_mlp_forward.1} parent=11 // pred_region
        _
      $region20: #{my_mlp_forward.1} parent=11 // pred_fallthru
        _
    $region12: #{my_mlp_forward.1} parent=5 // pred_fallthru
      _
    %p124 = scmp.lt.s32.totalorder %s9, 2
    // Predicated region
    $region21: #{my_mlp_forward.1} parent=5 // pred_check
      %p125 = pneg %p124
    $region22: #{my_mlp_forward.1} parent=5 // pred_check_branch
      %127 = sbr.rel (%p125) target = $region24
    $region23: #{my_mlp_forward.1} parent=5 // pred_region
      // Predicated region
      $region25: #{my_mlp_forward.1} parent=23 // pred_check
        %p128 = pneg %p29
      $region26: #{my_mlp_forward.1} parent=23 // pred_check_branch
        %130 = sbr.rel (%p128) target = $region28
      $region27: #{my_mlp_forward.1} parent=23 // pred_region
        %s131 = smul.u32 16, %s9
        %p132 = scmp.lt.s32.totalorder %s131, 31
        %s133 = scalar_select %p132, %s131, 31
        %s134 = smul.addr %s133, 7
        %s135 = smul.addr %s134, 8
        %s136 = scalar_lea.vmem %s0, %s135
        %s137 = smul.u32 16, %s9
      $region28: #{my_mlp_forward.1} parent=23 // pred_fallthru
        _
    $region24: #{my_mlp_forward.1} parent=5 // pred_fallthru
      _
    %p138 = scmp.le.s32.totalorder 1, %s9
    %p139 = scmp.lt.s32.totalorder %s9, 3
    %p140 = pnand %p138, %p139
    %p141 = pneg %p140
    // Predicated region
    $region29: #{my_mlp_forward.1} parent=5 // pred_check
      _
    $region30: #{my_mlp_forward.1} parent=5 // pred_check_branch
      %143 = sbr.rel (%p140) target = $region32
    $region31: #{my_mlp_forward.1} parent=5 // pred_region
      %s144 = ssub.s32 %s9, 1
      %s145 = smul.u32 16, %s14
      %p146 = scmp.lt.s32.totalorder %s145, 31
      %s147 = scalar_select %p146, %s145, 31
      %s148 = smul.addr %s147, 7
      %s149 = smul.addr %s148, 8
      %s150 = scalar_lea.vmem %s0, %s149
      %p151 = pneg %p35
      %p152 = pneg %p32
      %p153 = pneg %p56
      %p154 = pneg %p53
      %p155 = pneg %p77
      %p156 = pneg %p74
      %p157 = pneg %p103
      %p158 = pneg %p100
      %s159 = smul.u32 16, %s14
      %p160 = scmp.lt.s32.totalorder %s159, 31
      %s161 = scalar_select %p160, %s159, 31
      %s162 = smul.addr %s161, 8
      %s163 = scalar_lea.vmem %s3, %s162
      %s164 = smul.u32 16, %s14
      %p165 = scmp.lt.s32.totalorder %s164, 31
      %s166 = scalar_select %p165, %s164, 31
      %s167 = smul.addr %s166, 7
      %s168 = smul.addr %s167, 8
      %s169 = scalar_lea.vmem %s0, %s168
      %s170 = smul.u32 16, %s14
      %s171 = smul.u32 16, %s14
      %p172 = scmp.lt.s32.totalorder %s171, 31
      %s173 = scalar_select %p172, %s171, 31
      %s174 = smul.addr %s173, 8
      %s175 = scalar_lea.vmem %s3, %s174
      %s176 = smul.u32 16, %s14
      %v178 = vld [vmem:[%s169] sm:$0xff]
      %v179 = vld [vmem:[%s169 + $0x8] sm:$0xff]
      %v180 = vld [vmem:[%s169 + $0x10] sm:$0xff]
      %v181 = vld [vmem:[%s169 + $0x18] sm:$0xff]
      %v182 = vld [vmem:[%s169 + $0x20] sm:$0xff]
      %v183 = vld [vmem:[%s169 + $0x28] sm:$0xff]
      %v184 = vld [vmem:[%s169 + $0x30] sm:$0xff]
      %v185 = vld [vmem:[%s169 + $0x38] sm:$0xff]
      %v186 = vld [vmem:[%s169 + $0x40] sm:$0xff]
      %v187 = vld [vmem:[%s169 + $0x48] sm:$0xff]
      %v188 = vld [vmem:[%s169 + $0x50] sm:$0xff]
      %v189 = vld [vmem:[%s169 + $0x58] sm:$0xff]
      %v190 = vld [vmem:[%s169 + $0x60] sm:$0xff]
      %v191 = vld [vmem:[%s169 + $0x68] sm:$0xff]
      %v192 = vld [vmem:[%s169 + $0x70] sm:$0xff]
      %v193 = vld [vmem:[%s169 + $0x78] sm:$0xff]
      %v194 = vld [vmem:[%s169 + $0x80] sm:$0xff]
      %v195 = vld [vmem:[%s169 + $0x88] sm:$0xff]
      %v196 = vld [vmem:[%s169 + $0x90] sm:$0xff]
      %v197 = vld [vmem:[%s169 + $0x98] sm:$0xff]
      %v198 = vld [vmem:[%s169 + $0xa0] sm:$0xff]
      %v199 = vld [vmem:[%s169 + $0xa8] sm:$0xff]
      %v200 = vld [vmem:[%s169 + $0xb0] sm:$0xff]
      %v201 = vld [vmem:[%s169 + $0xb8] sm:$0xff]
      %v202 = vld [vmem:[%s169 + $0xc0] sm:$0xff]
      %v203 = vld [vmem:[%s169 + $0xc8] sm:$0xff]
      %v204 = vld [vmem:[%s169 + $0xd0] sm:$0xff]
      %v205 = vld [vmem:[%s169 + $0xd8] sm:$0xff]
      %v206 = vld [vmem:[%s169 + $0xe0] sm:$0xff]
      %v207 = vld [vmem:[%s169 + $0xe8] sm:$0xff]
      %v208 = vld [vmem:[%s169 + $0xf0] sm:$0xff]
      %v209 = vld [vmem:[%s169 + $0xf8] sm:$0xff]
      %v210 = vld [vmem:[%s169 + $0x100] sm:$0xff]
      %v211 = vld [vmem:[%s169 + $0x108] sm:$0xff]
      %v212 = vld [vmem:[%s169 + $0x110] sm:$0xff]
      %v213 = vld [vmem:[%s169 + $0x118] sm:$0xff]
      %v214 = vld [vmem:[%s169 + $0x120] sm:$0xff]
      %v215 = vld [vmem:[%s169 + $0x128] sm:$0xff]
      %v216 = vld [vmem:[%s169 + $0x130] sm:$0xff]
      %v217 = vld [vmem:[%s169 + $0x138] sm:$0xff]
      %v218 = vld [vmem:[%s169 + $0x140] sm:$0xff]
      %v219 = vld [vmem:[%s169 + $0x148] sm:$0xff]
      %v220 = vld [vmem:[%s169 + $0x150] sm:$0xff]
      %v221 = vld [vmem:[%s169 + $0x158] sm:$0xff]
      %v222 = vld [vmem:[%s169 + $0x160] sm:$0xff]
      %v223 = vld [vmem:[%s169 + $0x168] sm:$0xff]
      %v224 = vld [vmem:[%s169 + $0x170] sm:$0xff]
      %v225 = vld [vmem:[%s169 + $0x178] sm:$0xff]
      %v226 = vld [vmem:[%s169 + $0x180] sm:$0xff]
      %v227 = vld [vmem:[%s169 + $0x188] sm:$0xff]
      %v228 = vld [vmem:[%s169 + $0x190] sm:$0xff]
      %v229 = vld [vmem:[%s169 + $0x198] sm:$0xff]
      %v230 = vld [vmem:[%s169 + $0x1a0] sm:$0xff]
      %v231 = vld [vmem:[%s169 + $0x1a8] sm:$0xff]
      %v232 = vld [vmem:[%s169 + $0x1b0] sm:$0xff]
      %v233 = vld [vmem:[%s169 + $0x1b8] sm:$0xff]
      %v234 = vld [vmem:[%s169 + $0x1c0] sm:$0xff]
      %v235 = vld [vmem:[%s169 + $0x1c8] sm:$0xff]
      %v236 = vld [vmem:[%s169 + $0x1d0] sm:$0xff]
      %v237 = vld [vmem:[%s169 + $0x1d8] sm:$0xff]
      %v238 = vld [vmem:[%s169 + $0x1e0] sm:$0xff]
      %v239 = vld [vmem:[%s169 + $0x1e8] sm:$0xff]
      %v240 = vld [vmem:[%s169 + $0x1f0] sm:$0xff]
      %v241 = vld [vmem:[%s169 + $0x1f8] sm:$0xff]
      %v242 = vld [vmem:[%s169 + $0x200] sm:$0xff]
      %v243 = vld [vmem:[%s169 + $0x208] sm:$0xff]
      %v244 = vld [vmem:[%s169 + $0x210] sm:$0xff]
      %v245 = vld [vmem:[%s169 + $0x218] sm:$0xff]
      %v246 = vld [vmem:[%s169 + $0x220] sm:$0xff]
      %v247 = vld [vmem:[%s169 + $0x228] sm:$0xff]
      %v248 = vld [vmem:[%s169 + $0x230] sm:$0xff]
      %v249 = vld [vmem:[%s169 + $0x238] sm:$0xff]
      %v250 = vld [vmem:[%s169 + $0x240] sm:$0xff]
      %v251 = vld [vmem:[%s169 + $0x248] sm:$0xff]
      %v252 = vld [vmem:[%s169 + $0x250] sm:$0xff]
      %v253 = vld [vmem:[%s169 + $0x258] sm:$0xff]
      %v254 = vld [vmem:[%s169 + $0x260] sm:$0xff]
      %v255 = vld [vmem:[%s169 + $0x268] sm:$0xff]
      %v256 = vld [vmem:[%s169 + $0x270] sm:$0xff]
      %v257 = vld [vmem:[%s169 + $0x278] sm:$0xff]
      %v258 = vld [vmem:[%s169 + $0x280] sm:$0xff]
      %v259 = vld [vmem:[%s169 + $0x288] sm:$0xff]
      %v260 = vld [vmem:[%s169 + $0x290] sm:$0xff]
      %v261 = vld [vmem:[%s169 + $0x298] sm:$0xff]
      %v262 = vld [vmem:[%s169 + $0x2a0] sm:$0xff]
      %v263 = vld [vmem:[%s169 + $0x2a8] sm:$0xff]
      %v264 = vld [vmem:[%s169 + $0x2b0] sm:$0xff]
      %v265 = vld [vmem:[%s169 + $0x2b8] sm:$0xff]
      %v266 = vld [vmem:[%s169 + $0x2c0] sm:$0xff]
      %v267 = vld [vmem:[%s169 + $0x2c8] sm:$0xff]
      %v268 = vld [vmem:[%s169 + $0x2d0] sm:$0xff]
      %v269 = vld [vmem:[%s169 + $0x2d8] sm:$0xff]
      %v270 = vld [vmem:[%s169 + $0x2e0] sm:$0xff]
      %v271 = vld [vmem:[%s169 + $0x2e8] sm:$0xff]
      %v272 = vld [vmem:[%s169 + $0x2f0] sm:$0xff]
      %v273 = vld [vmem:[%s169 + $0x2f8] sm:$0xff]
      %v274 = vld [vmem:[%s169 + $0x300] sm:$0xff]
      %v275 = vld [vmem:[%s169 + $0x308] sm:$0xff]
      %v276 = vld [vmem:[%s169 + $0x310] sm:$0xff]
      %v277 = vld [vmem:[%s169 + $0x318] sm:$0xff]
      %v278 = vld [vmem:[%s169 + $0x320] sm:$0xff]
      %v279 = vld [vmem:[%s169 + $0x328] sm:$0xff]
      %v280 = vld [vmem:[%s169 + $0x330] sm:$0xff]
      %v281 = vld [vmem:[%s169 + $0x338] sm:$0xff]
      %v282 = vld [vmem:[%s169 + $0x340] sm:$0xff]
      %v283 = vld [vmem:[%s169 + $0x348] sm:$0xff]
      %v284 = vld [vmem:[%s169 + $0x350] sm:$0xff]
      %v285 = vld [vmem:[%s169 + $0x358] sm:$0xff]
      %v286 = vld [vmem:[%s169 + $0x360] sm:$0xff]
      %v287 = vld [vmem:[%s169 + $0x368] sm:$0xff]
      %v288 = vld [vmem:[%s169 + $0x370] sm:$0xff]
      %v289 = vld [vmem:[%s169 + $0x378] sm:$0xff]
      %v290 = vpack.c.bf16 %v185, %v178
      %v291 = vpack.c.bf16 %v186, %v179
      %v292 = vpack.c.bf16 %v187, %v180
      %v293 = vpack.c.bf16 %v188, %v181
      %v294 = vpack.c.bf16 %v189, %v182
      %v295 = vpack.c.bf16 %v190, %v183
      %v296 = vpack.c.bf16 %v191, %v184
      %v297 = vpack.c.bf16 %v199, %v192
      %v298 = vpack.c.bf16 %v200, %v193
      %v299 = vpack.c.bf16 %v201, %v194
      %v300 = vpack.c.bf16 %v202, %v195
      %v301 = vpack.c.bf16 %v203, %v196
      %v302 = vpack.c.bf16 %v204, %v197
      %v303 = vpack.c.bf16 %v205, %v198
      %v304 = vpack.c.bf16 %v213, %v206
      %v305 = vpack.c.bf16 %v214, %v207
      %v306 = vpack.c.bf16 %v215, %v208
      %v307 = vpack.c.bf16 %v216, %v209
      %v308 = vpack.c.bf16 %v217, %v210
      %v309 = vpack.c.bf16 %v218, %v211
      %v310 = vpack.c.bf16 %v219, %v212
      %v311 = vpack.c.bf16 %v227, %v220
      %v312 = vpack.c.bf16 %v228, %v221
      %v313 = vpack.c.bf16 %v229, %v222
      %v314 = vpack.c.bf16 %v230, %v223
      %v315 = vpack.c.bf16 %v231, %v224
      %v316 = vpack.c.bf16 %v232, %v225
      %v317 = vpack.c.bf16 %v233, %v226
      %v318 = vpack.c.bf16 %v241, %v234
      %v319 = vpack.c.bf16 %v242, %v235
      %v320 = vpack.c.bf16 %v243, %v236
      %v321 = vpack.c.bf16 %v244, %v237
      %v322 = vpack.c.bf16 %v245, %v238
      %v323 = vpack.c.bf16 %v246, %v239
      %v324 = vpack.c.bf16 %v247, %v240
      %v325 = vpack.c.bf16 %v255, %v248
      %v326 = vpack.c.bf16 %v256, %v249
      %v327 = vpack.c.bf16 %v257, %v250
      %v328 = vpack.c.bf16 %v258, %v251
      %v329 = vpack.c.bf16 %v259, %v252
      %v330 = vpack.c.bf16 %v260, %v253
      %v331 = vpack.c.bf16 %v261, %v254
      %v332 = vpack.c.bf16 %v269, %v262
      %v333 = vpack.c.bf16 %v270, %v263
      %v334 = vpack.c.bf16 %v271, %v264
      %v335 = vpack.c.bf16 %v272, %v265
      %v336 = vpack.c.bf16 %v273, %v266
      %v337 = vpack.c.bf16 %v274, %v267
      %v338 = vpack.c.bf16 %v275, %v268
      %v339 = vpack.c.bf16 %v283, %v276
      %v340 = vpack.c.bf16 %v284, %v277
      %v341 = vpack.c.bf16 %v285, %v278
      %v342 = vpack.c.bf16 %v286, %v279
      %v343 = vpack.c.bf16 %v287, %v280
      %v344 = vpack.c.bf16 %v288, %v281
      %v345 = vpack.c.bf16 %v289, %v282
      %v346 = vld [vmem:[%s1] sm:$0xf]
      %v347 = vld [vmem:[%s1 + $0x4] sm:$0xf]
      %v348 = vld [vmem:[%s1 + $0x8] sm:$0xf]
      %v349 = vld [vmem:[%s1 + $0xc] sm:$0xf]
      %v350 = vld [vmem:[%s1 + $0x10] sm:$0xf]
      %v351 = vld [vmem:[%s1 + $0x14] sm:$0xf]
      %v352 = vld [vmem:[%s1 + $0x18] sm:$0xf]
      %v353 = vld [vmem:[%s1 + $0x1c] sm:$0xf]
      %v354 = vld [vmem:[%s1 + $0x20] sm:$0xf]
      %v355 = vld [vmem:[%s1 + $0x24] sm:$0xf]
      %v356 = vld [vmem:[%s1 + $0x28] sm:$0xf]
      %v357 = vld [vmem:[%s1 + $0x2c] sm:$0xf]
      %v358 = vld [vmem:[%s1 + $0x30] sm:$0xf]
      %v359 = vld [vmem:[%s1 + $0x34] sm:$0xf]
      %v360 = vld [vmem:[%s1 + $0x38] sm:$0xf]
      %v361 = vld [vmem:[%s1 + $0x3c] sm:$0xf]
      %v362 = vld [vmem:[%s1 + $0x40] sm:$0xf]
      %v363 = vld [vmem:[%s1 + $0x44] sm:$0xf]
      %v364 = vld [vmem:[%s1 + $0x48] sm:$0xf]
      %v365 = vld [vmem:[%s1 + $0x4c] sm:$0xf]
      %v366 = vld [vmem:[%s1 + $0x50] sm:$0xf]
      %v367 = vld [vmem:[%s1 + $0x54] sm:$0xf]
      %v368 = vld [vmem:[%s1 + $0x58] sm:$0xf]
      %v369 = vld [vmem:[%s1 + $0x5c] sm:$0xf]
      %v370 = vld [vmem:[%s1 + $0x60] sm:$0xf]
      %v371 = vld [vmem:[%s1 + $0x64] sm:$0xf]
      %v372 = vld [vmem:[%s1 + $0x68] sm:$0xf]
      %v373 = vld [vmem:[%s1 + $0x6c] sm:$0xf]
      %v374 = vld [vmem:[%s1 + $0x70] sm:$0xf]
      %v375 = vld [vmem:[%s1 + $0x74] sm:$0xf]
      %v376 = vld [vmem:[%s1 + $0x78] sm:$0xf]
      %v377 = vld [vmem:[%s1 + $0x7c] sm:$0xf]
      %v378 = vld [vmem:[%s1 + $0x80] sm:$0xf]
      %v379 = vld [vmem:[%s1 + $0x84] sm:$0xf]
      %v380 = vld [vmem:[%s1 + $0x88] sm:$0xf]
      %v381 = vld [vmem:[%s1 + $0x8c] sm:$0xf]
      %v382 = vld [vmem:[%s1 + $0x90] sm:$0xf]
      %v383 = vld [vmem:[%s1 + $0x94] sm:$0xf]
      %v384 = vld [vmem:[%s1 + $0x98] sm:$0xf]
      %v385 = vld [vmem:[%s1 + $0x9c] sm:$0xf]
      %v386 = vld [vmem:[%s1 + $0xa0] sm:$0xf]
      %v387 = vld [vmem:[%s1 + $0xa4] sm:$0xf]
      %v388 = vld [vmem:[%s1 + $0xa8] sm:$0xf]
      %v389 = vld [vmem:[%s1 + $0xac] sm:$0xf]
      %v390 = vld [vmem:[%s1 + $0xb0] sm:$0xf]
      %v391 = vld [vmem:[%s1 + $0xb4] sm:$0xf]
      %v392 = vld [vmem:[%s1 + $0xb8] sm:$0xf]
      %v393 = vld [vmem:[%s1 + $0xbc] sm:$0xf]
      %v394 = vld [vmem:[%s1 + $0xc0] sm:$0xf]
      %v395 = vld [vmem:[%s1 + $0xc4] sm:$0xf]
      %v396 = vld [vmem:[%s1 + $0xc8] sm:$0xf]
      %v397 = vld [vmem:[%s1 + $0xcc] sm:$0xf]
      %v398 = vld [vmem:[%s1 + $0xd0] sm:$0xf]
      %v399 = vld [vmem:[%s1 + $0xd4] sm:$0xf]
      %v400 = vld [vmem:[%s1 + $0xd8] sm:$0xf]
      %v401 = vld [vmem:[%s1 + $0xdc] sm:$0xf]
      %v402 = vld [vmem:[%s1 + $0xe0] sm:$0xf]
      %v403 = vld [vmem:[%s1 + $0xe4] sm:$0xf]
      %v404 = vld [vmem:[%s1 + $0xe8] sm:$0xf]
      %v405 = vld [vmem:[%s1 + $0xec] sm:$0xf]
      %v406 = vld [vmem:[%s1 + $0xf0] sm:$0xf]
      %v407 = vld [vmem:[%s1 + $0xf4] sm:$0xf]
      %v408 = vld [vmem:[%s1 + $0xf8] sm:$0xf]
      %v409 = vld [vmem:[%s1 + $0xfc] sm:$0xf]
      %v410 = vld [vmem:[%s1 + $0x100] sm:$0xf]
      %v411 = vld [vmem:[%s1 + $0x104] sm:$0xf]
      %v412 = vld [vmem:[%s1 + $0x108] sm:$0xf]
      %v413 = vld [vmem:[%s1 + $0x10c] sm:$0xf]
      %v414 = vld [vmem:[%s1 + $0x110] sm:$0xf]
      %v415 = vld [vmem:[%s1 + $0x114] sm:$0xf]
      %v416 = vld [vmem:[%s1 + $0x118] sm:$0xf]
      %v417 = vld [vmem:[%s1 + $0x11c] sm:$0xf]
      %v418 = vld [vmem:[%s1 + $0x120] sm:$0xf]
      %v419 = vld [vmem:[%s1 + $0x124] sm:$0xf]
      %v420 = vld [vmem:[%s1 + $0x128] sm:$0xf]
      %v421 = vld [vmem:[%s1 + $0x12c] sm:$0xf]
      %v422 = vld [vmem:[%s1 + $0x130] sm:$0xf]
      %v423 = vld [vmem:[%s1 + $0x134] sm:$0xf]
      %v424 = vld [vmem:[%s1 + $0x138] sm:$0xf]
      %v425 = vld [vmem:[%s1 + $0x13c] sm:$0xf]
      %v426 = vld [vmem:[%s1 + $0x140] sm:$0xf]
      %v427 = vld [vmem:[%s1 + $0x144] sm:$0xf]
      %v428 = vld [vmem:[%s1 + $0x148] sm:$0xf]
      %v429 = vld [vmem:[%s1 + $0x14c] sm:$0xf]
      %v430 = vld [vmem:[%s1 + $0x150] sm:$0xf]
      %v431 = vld [vmem:[%s1 + $0x154] sm:$0xf]
      %v432 = vld [vmem:[%s1 + $0x158] sm:$0xf]
      %v433 = vld [vmem:[%s1 + $0x15c] sm:$0xf]
      %v434 = vld [vmem:[%s1 + $0x160] sm:$0xf]
      %v435 = vld [vmem:[%s1 + $0x164] sm:$0xf]
      %v436 = vld [vmem:[%s1 + $0x168] sm:$0xf]
      %v437 = vld [vmem:[%s1 + $0x16c] sm:$0xf]
      %v438 = vld [vmem:[%s1 + $0x170] sm:$0xf]
      %v439 = vld [vmem:[%s1 + $0x174] sm:$0xf]
      %v440 = vld [vmem:[%s1 + $0x178] sm:$0xf]
      %v441 = vld [vmem:[%s1 + $0x17c] sm:$0xf]
      %v442 = vld [vmem:[%s1 + $0x180] sm:$0xf]
      %v443 = vld [vmem:[%s1 + $0x184] sm:$0xf]
      %v444 = vld [vmem:[%s2] sm:$0x1]
      %v446 = vlaneseq
      %v447 = vshrl.u32 %v446, 7
      %v448 = vsub.s32 0, %v447
      %v449 = vrot.slane %v444, %v448
      %v549 = vunpack.c.l.b16 %v346
      %v550 = vunpack.c.l.b16 %v347
      %v551 = vunpack.c.l.b16 %v348
      %v552 = vunpack.c.l.b16 %v349
      %v553 = vunpack.c.l.b16 %v350
      %v554 = vunpack.c.l.b16 %v351
      %v555 = vunpack.c.l.b16 %v352
      %v556 = vunpack.c.l.b16 %v353
      %v557 = vunpack.c.l.b16 %v354
      %v558 = vunpack.c.l.b16 %v355
      %v559 = vunpack.c.l.b16 %v356
      %v560 = vunpack.c.l.b16 %v357
      %v561 = vunpack.c.l.b16 %v358
      %v562 = vunpack.c.l.b16 %v359
      %v563 = vunpack.c.l.b16 %v360
      %v564 = vunpack.c.l.b16 %v361
      %v565 = vunpack.c.l.b16 %v362
      %v566 = vunpack.c.l.b16 %v363
      %v567 = vunpack.c.l.b16 %v364
      %v568 = vunpack.c.l.b16 %v365
      %v569 = vunpack.c.l.b16 %v366
      %v570 = vunpack.c.l.b16 %v367
      %v571 = vunpack.c.l.b16 %v368
      %v572 = vunpack.c.l.b16 %v369
      %v573 = vunpack.c.l.b16 %v370
      %v574 = vunpack.c.l.b16 %v371
      %v575 = vunpack.c.l.b16 %v372
      %v576 = vunpack.c.l.b16 %v373
      %v577 = vunpack.c.l.b16 %v374
      %v578 = vunpack.c.l.b16 %v375
      %v579 = vunpack.c.l.b16 %v376
      %v580 = vunpack.c.l.b16 %v377
      %v581 = vunpack.c.l.b16 %v378
      %v582 = vunpack.c.l.b16 %v379
      %v583 = vunpack.c.l.b16 %v380
      %v584 = vunpack.c.l.b16 %v381
      %v585 = vunpack.c.l.b16 %v382
      %v586 = vunpack.c.l.b16 %v383
      %v587 = vunpack.c.l.b16 %v384
      %v588 = vunpack.c.l.b16 %v385
      %v589 = vunpack.c.l.b16 %v386
      %v590 = vunpack.c.l.b16 %v387
      %v591 = vunpack.c.l.b16 %v388
      %v592 = vunpack.c.l.b16 %v389
      %v593 = vunpack.c.l.b16 %v390
      %v594 = vunpack.c.l.b16 %v391
      %v595 = vunpack.c.l.b16 %v392
      %v596 = vunpack.c.l.b16 %v393
      %v597 = vunpack.c.l.b16 %v394
      %v598 = vunpack.c.l.b16 %v395
      %v599 = vunpack.c.l.b16 %v396
      %v600 = vunpack.c.l.b16 %v397
      %v601 = vunpack.c.l.b16 %v398
      %v602 = vunpack.c.l.b16 %v399
      %v603 = vunpack.c.l.b16 %v400
      %v604 = vunpack.c.l.b16 %v401
      %v605 = vunpack.c.l.b16 %v402
      %v606 = vunpack.c.l.b16 %v403
      %v607 = vunpack.c.l.b16 %v404
      %v608 = vunpack.c.l.b16 %v405
      %v609 = vunpack.c.l.b16 %v406
      %v610 = vunpack.c.l.b16 %v407
      %v611 = vunpack.c.l.b16 %v408
      %v612 = vunpack.c.l.b16 %v409
      %v613 = vunpack.c.l.b16 %v410
      %v614 = vunpack.c.l.b16 %v411
      %v615 = vunpack.c.l.b16 %v412
      %v616 = vunpack.c.l.b16 %v413
      %v617 = vunpack.c.l.b16 %v414
      %v618 = vunpack.c.l.b16 %v415
      %v619 = vunpack.c.l.b16 %v416
      %v620 = vunpack.c.l.b16 %v417
      %v621 = vunpack.c.l.b16 %v418
      %v622 = vunpack.c.l.b16 %v419
      %v623 = vunpack.c.l.b16 %v420
      %v624 = vunpack.c.l.b16 %v421
      %v625 = vunpack.c.l.b16 %v422
      %v626 = vunpack.c.l.b16 %v423
      %v627 = vunpack.c.l.b16 %v424
      %v628 = vunpack.c.l.b16 %v425
      %v629 = vunpack.c.l.b16 %v426
      %v630 = vunpack.c.l.b16 %v427
      %v631 = vunpack.c.l.b16 %v428
      %v632 = vunpack.c.l.b16 %v429
      %v633 = vunpack.c.l.b16 %v430
      %v634 = vunpack.c.l.b16 %v431
      %v635 = vunpack.c.l.b16 %v432
      %v636 = vunpack.c.l.b16 %v433
      %v637 = vunpack.c.l.b16 %v434
      %v638 = vunpack.c.l.b16 %v435
      %v639 = vunpack.c.l.b16 %v436
      %v640 = vunpack.c.l.b16 %v437
      %v641 = vunpack.c.l.b16 %v438
      %v642 = vunpack.c.l.b16 %v439
      %v643 = vunpack.c.l.b16 %v440
      %v644 = vunpack.c.l.b16 %v441
      %v645 = vunpack.c.l.b16 %v442
      %v646 = vunpack.c.l.b16 %v443
      %v647 = vpack.c.b16 %v550, %v549
      %v648 = vpack.c.b16 %v552, %v551
      %v649 = vpack.c.b16 %v554, %v553
      %v650 = vpack.c.b16 %v556, %v555
      %v651 = vpack.c.b16 %v558, %v557
      %v652 = vpack.c.b16 %v560, %v559
      %v653 = vpack.c.b16 %v562, %v561
      %v654 = vpack.c.b16 %v564, %v563
      %v655 = vpack.c.b16 %v566, %v565
      %v656 = vpack.c.b16 %v568, %v567
      %v657 = vpack.c.b16 %v570, %v569
      %v658 = vpack.c.b16 %v572, %v571
      %v659 = vpack.c.b16 %v574, %v573
      %v660 = vpack.c.b16 %v576, %v575
      %v661 = vpack.c.b16 %v578, %v577
      %v662 = vpack.c.b16 %v580, %v579
      %v663 = vpack.c.b16 %v582, %v581
      %v664 = vpack.c.b16 %v584, %v583
      %v665 = vpack.c.b16 %v586, %v585
      %v666 = vpack.c.b16 %v588, %v587
      %v667 = vpack.c.b16 %v590, %v589
      %v668 = vpack.c.b16 %v592, %v591
      %v669 = vpack.c.b16 %v594, %v593
      %v670 = vpack.c.b16 %v596, %v595
      %v671 = vpack.c.b16 %v598, %v597
      %v672 = vpack.c.b16 %v600, %v599
      %v673 = vpack.c.b16 %v602, %v601
      %v674 = vpack.c.b16 %v604, %v603
      %v675 = vpack.c.b16 %v606, %v605
      %v676 = vpack.c.b16 %v608, %v607
      %v677 = vpack.c.b16 %v610, %v609
      %v678 = vpack.c.b16 %v612, %v611
      %v679 = vpack.c.b16 %v614, %v613
      %v680 = vpack.c.b16 %v616, %v615
      %v681 = vpack.c.b16 %v618, %v617
      %v682 = vpack.c.b16 %v620, %v619
      %v683 = vpack.c.b16 %v622, %v621
      %v684 = vpack.c.b16 %v624, %v623
      %v685 = vpack.c.b16 %v626, %v625
      %v686 = vpack.c.b16 %v628, %v627
      %v687 = vpack.c.b16 %v630, %v629
      %v688 = vpack.c.b16 %v632, %v631
      %v689 = vpack.c.b16 %v634, %v633
      %v690 = vpack.c.b16 %v636, %v635
      %v691 = vpack.c.b16 %v638, %v637
      %v692 = vpack.c.b16 %v640, %v639
      %v693 = vpack.c.b16 %v642, %v641
      %v694 = vpack.c.b16 %v644, %v643
      %v695 = vpack.c.b16 %v646, %v645
      %vm745 = vcmask 130048
      %v747 = vsel %vm745, %v296, 0
      %v750 = vsel %vm745, %v303, 0
      %v753 = vsel %vm745, %v310, 0
      %v756 = vsel %vm745, %v317, 0
      %v759 = vsel %vm745, %v324, 0
      %v762 = vsel %vm745, %v331, 0
      %v765 = vsel %vm745, %v338, 0
      %v768 = vsel %vm745, %v345, 0
      %770 = vmatprep.subr.bf16.mxu0 0
      %771 = vmatpush1.bf16.msra.mxu0 %v647
      %772 = vmatprep.subr.bf16.mxu0 0
      %773 = vmatpush1.bf16.msra.mxu0 %v648
      %774 = vmatprep.subr.bf16.mxu0 0
      %775 = vmatpush1.bf16.msra.mxu0 %v649
      %776 = vmatprep.subr.bf16.mxu0 0
      %777 = vmatpush1.bf16.msra.mxu0 %v650
      %778 = vmatprep.subr.bf16.mxu0 0
      %779 = vmatpush1.bf16.msra.mxu0 %v651
      %780 = vmatprep.subr.bf16.mxu0 0
      %781 = vmatpush1.bf16.msra.mxu0 %v652
      %782 = vmatprep.subr.bf16.mxu0 0
      %783 = vmatpush1.bf16.msra.mxu0 %v653
      %784 = vmatprep.subr.bf16.mxu0 0
      %785 = vmatpush1.bf16.msra.mxu0 %v654
      %786 = vmatprep.subr.bf16.mxu0 0
      %787 = vmatpush1.bf16.msra.mxu0 %v655
      %788 = vmatprep.subr.bf16.mxu0 0
      %789 = vmatpush1.bf16.msra.mxu0 %v656
      %790 = vmatprep.subr.bf16.mxu0 0
      %791 = vmatpush1.bf16.msra.mxu0 %v657
      %792 = vmatprep.subr.bf16.mxu0 0
      %793 = vmatpush1.bf16.msra.mxu0 %v658
      %794 = vmatprep.subr.bf16.mxu0 0
      %795 = vmatpush1.bf16.msra.mxu0 %v659
      %796 = vmatprep.subr.bf16.mxu0 0
      %797 = vmatpush1.bf16.msra.mxu0 %v660
      %798 = vmatprep.subr.bf16.mxu0 0
      %799 = vmatpush1.bf16.msra.mxu0 %v661
      %800 = vmatprep.subr.bf16.mxu0 0
      %801 = vmatpush1.bf16.msra.mxu0 %v662
      %802 = vmatprep.mubr.bf16.mxu0 %v291
      %803 = vmatmul.mubr.bf16.gmra.mrb[0].mxu0 %v290
      %v804 = vpop.f32.mrb[0].mxu0
      %v805 = vadd.f32 %v449, %v804
      %v806 = vpop.f32.mrb[0].mxu0
      %v807 = vpop.f32.mrb[0].mxu0
      %v808 = vadd.f32 %v449, %v807
      %v809 = vpop.f32.mrb[0].mxu0
      %810 = vmatprep.mubr.bf16.mxu0 %v298
      %811 = vmatmul.mubr.bf16.gmra.mrb[0].mxu0 %v297
      %v812 = vpop.f32.mrb[0].mxu0
      %v813 = vadd.f32 %v449, %v812
      %v814 = vpop.f32.mrb[0].mxu0
      %v815 = vpop.f32.mrb[0].mxu0
      %v816 = vadd.f32 %v449, %v815
      %v817 = vpop.f32.mrb[0].mxu0
      %818 = vmatprep.mubr.bf16.mxu0 %v305
      %819 = vmatmul.mubr.bf16.gmra.mrb[0].mxu0 %v304
      %v820 = vpop.f32.mrb[0].mxu0
      %v821 = vadd.f32 %v449, %v820
      %v822 = vpop.f32.mrb[0].mxu0
      %v823 = vpop.f32.mrb[0].mxu0
      %v824 = vadd.f32 %v449, %v823
      %v825 = vpop.f32.mrb[0].mxu0
      %826 = vmatprep.mubr.bf16.mxu0 %v312
      %827 = vmatmul.mubr.bf16.gmra.mrb[0].mxu0 %v311
      %v828 = vpop.f32.mrb[0].mxu0
      %v829 = vadd.f32 %v449, %v828
      %v830 = vpop.f32.mrb[0].mxu0
      %v831 = vpop.f32.mrb[0].mxu0
      %v832 = vadd.f32 %v449, %v831
      %v833 = vpop.f32.mrb[0].mxu0
      %834 = vmatprep.mubr.bf16.mxu0 %v319
      %835 = vmatmul.mubr.bf16.gmra.mrb[0].mxu0 %v318
      %v836 = vpop.f32.mrb[0].mxu0
      %v837 = vadd.f32 %v449, %v836
      %v838 = vpop.f32.mrb[0].mxu0
      %v839 = vpop.f32.mrb[0].mxu0
      %v840 = vadd.f32 %v449, %v839
      %v841 = vpop.f32.mrb[0].mxu0
      %842 = vmatprep.mubr.bf16.mxu0 %v326
      %843 = vmatmul.mubr.bf16.gmra.mrb[0].mxu0 %v325
      %v844 = vpop.f32.mrb[0].mxu0
      %v845 = vadd.f32 %v449, %v844
      %v846 = vpop.f32.mrb[0].mxu0
      %v847 = vpop.f32.mrb[0].mxu0
      %v848 = vadd.f32 %v449, %v847
      %v849 = vpop.f32.mrb[0].mxu0
      %850 = vmatprep.mubr.bf16.mxu0 %v333
      %851 = vmatmul.mubr.bf16.gmra.mrb[0].mxu0 %v332
      %v852 = vpop.f32.mrb[0].mxu0
      %v853 = vadd.f32 %v449, %v852
      %v854 = vpop.f32.mrb[0].mxu0
      %v855 = vpop.f32.mrb[0].mxu0
      %v856 = vadd.f32 %v449, %v855
      %v857 = vpop.f32.mrb[0].mxu0
      %858 = vmatprep.mubr.bf16.mxu0 %v340
      %859 = vmatmul.mubr.bf16.gmra.mrb[0].mxu0 %v339
      %v860 = vpop.f32.mrb[0].mxu0
      %v861 = vadd.f32 %v449, %v860
      %v862 = vpop.f32.mrb[0].mxu0
      %v863 = vpop.f32.mrb[0].mxu0
      %v864 = vadd.f32 %v449, %v863
      %v865 = vpop.f32.mrb[0].mxu0
      %866 = vdwg.mxu0
      %867 = vmatprep.subr.bf16.mxu0 0
      %868 = vmatpush1.bf16.msra.mxu0 %v663
      %869 = vmatprep.subr.bf16.mxu0 0
      %870 = vmatpush1.bf16.msra.mxu0 %v664
      %871 = vmatprep.subr.bf16.mxu0 0
      %872 = vmatpush1.bf16.msra.mxu0 %v665
      %873 = vmatprep.subr.bf16.mxu0 0
      %874 = vmatpush1.bf16.msra.mxu0 %v666
      %875 = vmatprep.subr.bf16.mxu0 0
      %876 = vmatpush1.bf16.msra.mxu0 %v667
      %877 = vmatprep.subr.bf16.mxu0 0
      %878 = vmatpush1.bf16.msra.mxu0 %v668
      %879 = vmatprep.subr.bf16.mxu0 0
      %880 = vmatpush1.bf16.msra.mxu0 %v669
      %881 = vmatprep.subr.bf16.mxu0 0
      %882 = vmatpush1.bf16.msra.mxu0 %v670
      %883 = vmatprep.subr.bf16.mxu0 0
      %884 = vmatpush1.bf16.msra.mxu0 %v671
      %885 = vmatprep.subr.bf16.mxu0 0
      %886 = vmatpush1.bf16.msra.mxu0 %v672
      %887 = vmatprep.subr.bf16.mxu0 0
      %888 = vmatpush1.bf16.msra.mxu0 %v673
      %889 = vmatprep.subr.bf16.mxu0 0
      %890 = vmatpush1.bf16.msra.mxu0 %v674
      %891 = vmatprep.subr.bf16.mxu0 0
      %892 = vmatpush1.bf16.msra.mxu0 %v675
      %893 = vmatprep.subr.bf16.mxu0 0
      %894 = vmatpush1.bf16.msra.mxu0 %v676
      %895 = vmatprep.subr.bf16.mxu0 0
      %896 = vmatpush1.bf16.msra.mxu0 %v677
      %897 = vmatprep.subr.bf16.mxu0 0
      %898 = vmatpush1.bf16.msra.mxu0 %v678
      %899 = vmatprep.mubr.bf16.mxu0 %v293
      %900 = vmatmul.mubr.bf16.gmra.mrb[0].mxu0 %v292
      %v901 = vpop.f32.mrb[0].mxu0
      %v902 = vadd.f32 %v805, %v901
      %v903 = vpop.f32.mrb[0].mxu0
      %v904 = vpop.f32.mrb[0].mxu0
      %v905 = vadd.f32 %v808, %v904
      %v906 = vpop.f32.mrb[0].mxu0
      %907 = vmatprep.mubr.bf16.mxu0 %v300
      %908 = vmatmul.mubr.bf16.gmra.mrb[0].mxu0 %v299
      %v909 = vpop.f32.mrb[0].mxu0
      %v910 = vadd.f32 %v813, %v909
      %v911 = vpop.f32.mrb[0].mxu0
      %v912 = vpop.f32.mrb[0].mxu0
      %v913 = vadd.f32 %v816, %v912
      %v914 = vpop.f32.mrb[0].mxu0
      %915 = vmatprep.mubr.bf16.mxu0 %v307
      %916 = vmatmul.mubr.bf16.gmra.mrb[0].mxu0 %v306
      %v917 = vpop.f32.mrb[0].mxu0
      %v918 = vadd.f32 %v821, %v917
      %v919 = vpop.f32.mrb[0].mxu0
      %v920 = vpop.f32.mrb[0].mxu0
      %v921 = vadd.f32 %v824, %v920
      %v922 = vpop.f32.mrb[0].mxu0
      %923 = vmatprep.mubr.bf16.mxu0 %v314
      %924 = vmatmul.mubr.bf16.gmra.mrb[0].mxu0 %v313
      %v925 = vpop.f32.mrb[0].mxu0
      %v926 = vadd.f32 %v829, %v925
      %v927 = vpop.f32.mrb[0].mxu0
      %v928 = vpop.f32.mrb[0].mxu0
      %v929 = vadd.f32 %v832, %v928
      %v930 = vpop.f32.mrb[0].mxu0
      %931 = vmatprep.mubr.bf16.mxu0 %v321
      %932 = vmatmul.mubr.bf16.gmra.mrb[0].mxu0 %v320
      %v933 = vpop.f32.mrb[0].mxu0
      %v934 = vadd.f32 %v837, %v933
      %v935 = vpop.f32.mrb[0].mxu0
      %v936 = vpop.f32.mrb[0].mxu0
      %v937 = vadd.f32 %v840, %v936
      %v938 = vpop.f32.mrb[0].mxu0
      %939 = vmatprep.mubr.bf16.mxu0 %v328
      %940 = vmatmul.mubr.bf16.gmra.mrb[0].mxu0 %v327
      %v941 = vpop.f32.mrb[0].mxu0
      %v942 = vadd.f32 %v845, %v941
      %v943 = vpop.f32.mrb[0].mxu0
      %v944 = vpop.f32.mrb[0].mxu0
      %v945 = vadd.f32 %v848, %v944
      %v946 = vpop.f32.mrb[0].mxu0
      %947 = vmatprep.mubr.bf16.mxu0 %v335
      %948 = vmatmul.mubr.bf16.gmra.mrb[0].mxu0 %v334
      %v949 = vpop.f32.mrb[0].mxu0
      %v950 = vadd.f32 %v853, %v949
      %v951 = vpop.f32.mrb[0].mxu0
      %v952 = vpop.f32.mrb[0].mxu0
      %v953 = vadd.f32 %v856, %v952
      %v954 = vpop.f32.mrb[0].mxu0
      %955 = vmatprep.mubr.bf16.mxu0 %v342
      %956 = vmatmul.mubr.bf16.gmra.mrb[0].mxu0 %v341
      %v957 = vpop.f32.mrb[0].mxu0
      %v958 = vadd.f32 %v861, %v957
      %v959 = vpop.f32.mrb[0].mxu0
      %v960 = vpop.f32.mrb[0].mxu0
      %v961 = vadd.f32 %v864, %v960
      %v962 = vpop.f32.mrb[0].mxu0
      %963 = vdwg.mxu0
      %964 = vmatprep.subr.bf16.mxu0 0
      %965 = vmatpush1.bf16.msra.mxu0 %v679
      %966 = vmatprep.subr.bf16.mxu0 0
      %967 = vmatpush1.bf16.msra.mxu0 %v680
      %968 = vmatprep.subr.bf16.mxu0 0
      %969 = vmatpush1.bf16.msra.mxu0 %v681
      %970 = vmatprep.subr.bf16.mxu0 0
      %971 = vmatpush1.bf16.msra.mxu0 %v682
      %972 = vmatprep.subr.bf16.mxu0 0
      %973 = vmatpush1.bf16.msra.mxu0 %v683
      %974 = vmatprep.subr.bf16.mxu0 0
      %975 = vmatpush1.bf16.msra.mxu0 %v684
      %976 = vmatprep.subr.bf16.mxu0 0
      %977 = vmatpush1.bf16.msra.mxu0 %v685
      %978 = vmatprep.subr.bf16.mxu0 0
      %979 = vmatpush1.bf16.msra.mxu0 %v686
      %980 = vmatprep.subr.bf16.mxu0 0
      %981 = vmatpush1.bf16.msra.mxu0 %v687
      %982 = vmatprep.subr.bf16.mxu0 0
      %983 = vmatpush1.bf16.msra.mxu0 %v688
      %984 = vmatprep.subr.bf16.mxu0 0
      %985 = vmatpush1.bf16.msra.mxu0 %v689
      %986 = vmatprep.subr.bf16.mxu0 0
      %987 = vmatpush1.bf16.msra.mxu0 %v690
      %988 = vmatprep.subr.bf16.mxu0 0
      %989 = vmatpush1.bf16.msra.mxu0 %v691
      %990 = vmatprep.subr.bf16.mxu0 0
      %991 = vmatpush1.bf16.msra.mxu0 %v692
      %992 = vmatprep.subr.bf16.mxu0 0
      %993 = vmatpush1.bf16.msra.mxu0 %v693
      %994 = vmatprep.subr.bf16.mxu0 0
      %995 = vmatpush1.bf16.msra.mxu0 %v694
      %996 = vmatprep.mubr.bf16.mxu0 %v295
      %997 = vmatmul.mubr.bf16.gmra.mrb[0].mxu0 %v294
      %v998 = vpop.f32.mrb[0].mxu0
      %v999 = vadd.f32 %v902, %v998
      %v1000 = vpop.f32.mrb[0].mxu0
      %v1001 = vpop.f32.mrb[0].mxu0
      %v1002 = vadd.f32 %v905, %v1001
      %v1003 = vpop.f32.mrb[0].mxu0
      %1004 = vmatprep.mubr.bf16.mxu0 %v302
      %1005 = vmatmul.mubr.bf16.gmra.mrb[0].mxu0 %v301
      %v1006 = vpop.f32.mrb[0].mxu0
      %v1007 = vadd.f32 %v910, %v1006
      %v1008 = vpop.f32.mrb[0].mxu0
      %v1009 = vpop.f32.mrb[0].mxu0
      %v1010 = vadd.f32 %v913, %v1009
      %v1011 = vpop.f32.mrb[0].mxu0
      %1012 = vmatprep.mubr.bf16.mxu0 %v309
      %1013 = vmatmul.mubr.bf16.gmra.mrb[0].mxu0 %v308
      %v1014 = vpop.f32.mrb[0].mxu0
      %v1015 = vadd.f32 %v918, %v1014
      %v1016 = vpop.f32.mrb[0].mxu0
      %v1017 = vpop.f32.mrb[0].mxu0
      %v1018 = vadd.f32 %v921, %v1017
      %v1019 = vpop.f32.mrb[0].mxu0
      %1020 = vmatprep.mubr.bf16.mxu0 %v316
      %1021 = vmatmul.mubr.bf16.gmra.mrb[0].mxu0 %v315
      %v1022 = vpop.f32.mrb[0].mxu0
      %v1023 = vadd.f32 %v926, %v1022
      %v1024 = vpop.f32.mrb[0].mxu0
      %v1025 = vpop.f32.mrb[0].mxu0
      %v1026 = vadd.f32 %v929, %v1025
      %v1027 = vpop.f32.mrb[0].mxu0
      %1028 = vmatprep.mubr.bf16.mxu0 %v323
      %1029 = vmatmul.mubr.bf16.gmra.mrb[0].mxu0 %v322
      %v1030 = vpop.f32.mrb[0].mxu0
      %v1031 = vadd.f32 %v934, %v1030
      %v1032 = vpop.f32.mrb[0].mxu0
      %v1033 = vpop.f32.mrb[0].mxu0
      %v1034 = vadd.f32 %v937, %v1033
      %v1035 = vpop.f32.mrb[0].mxu0
      %1036 = vmatprep.mubr.bf16.mxu0 %v330
      %1037 = vmatmul.mubr.bf16.gmra.mrb[0].mxu0 %v329
      %v1038 = vpop.f32.mrb[0].mxu0
      %v1039 = vadd.f32 %v942, %v1038
      %v1040 = vpop.f32.mrb[0].mxu0
      %v1041 = vpop.f32.mrb[0].mxu0
      %v1042 = vadd.f32 %v945, %v1041
      %v1043 = vpop.f32.mrb[0].mxu0
      %1044 = vmatprep.mubr.bf16.mxu0 %v337
      %1045 = vmatmul.mubr.bf16.gmra.mrb[0].mxu0 %v336
      %v1046 = vpop.f32.mrb[0].mxu0
      %v1047 = vadd.f32 %v950, %v1046
      %v1048 = vpop.f32.mrb[0].mxu0
      %v1049 = vpop.f32.mrb[0].mxu0
      %v1050 = vadd.f32 %v953, %v1049
      %v1051 = vpop.f32.mrb[0].mxu0
      %1052 = vmatprep.mubr.bf16.mxu0 %v344
      %1053 = vmatmul.mubr.bf16.gmra.mrb[0].mxu0 %v343
      %v1054 = vpop.f32.mrb[0].mxu0
      %v1055 = vadd.f32 %v958, %v1054
      %v1056 = vpop.f32.mrb[0].mxu0
      %v1057 = vpop.f32.mrb[0].mxu0
      %v1058 = vadd.f32 %v961, %v1057
      %v1059 = vpop.f32.mrb[0].mxu0
      %1060 = vdwg.mxu0
      %1061 = vmatprep.subr.bf16.mxu0 0
      %1062 = vmatpush1.bf16.msra.mxu0 %v695
      %1063 = vmatprep.subr.bf16.mxu0 0
      %1064 = vmatpush1.bf16.msra.mxu0 0
      %1065 = vmatprep.subr.bf16.mxu0 0
      %1066 = vmatpush1.bf16.msra.mxu0 0
      %1067 = vmatprep.subr.bf16.mxu0 0
      %1068 = vmatpush1.bf16.msra.mxu0 0
      %1069 = vmatprep.subr.bf16.mxu0 0
      %1070 = vmatpush1.bf16.msra.mxu0 0
      %1071 = vmatprep.subr.bf16.mxu0 0
      %1072 = vmatpush1.bf16.msra.mxu0 0
      %1073 = vmatprep.subr.bf16.mxu0 0
      %1074 = vmatpush1.bf16.msra.mxu0 0
      %1075 = vmatprep.subr.bf16.mxu0 0
      %1076 = vmatpush1.bf16.msra.mxu0 0
      %1077 = vmatprep.subr.bf16.mxu0 0
      %1078 = vmatpush1.bf16.msra.mxu0 0
      %1079 = vmatprep.subr.bf16.mxu0 0
      %1080 = vmatpush1.bf16.msra.mxu0 0
      %1081 = vmatprep.subr.bf16.mxu0 0
      %1082 = vmatpush1.bf16.msra.mxu0 0
      %1083 = vmatprep.subr.bf16.mxu0 0
      %1084 = vmatpush1.bf16.msra.mxu0 0
      %1085 = vmatprep.subr.bf16.mxu0 0
      %1086 = vmatpush1.bf16.msra.mxu0 0
      %1087 = vmatprep.subr.bf16.mxu0 0
      %1088 = vmatpush1.bf16.msra.mxu0 0
      %1089 = vmatprep.subr.bf16.mxu0 0
      %1090 = vmatpush1.bf16.msra.mxu0 0
      %1091 = vmatprep.subr.bf16.mxu0 0
      %1092 = vmatpush1.bf16.msra.mxu0 0
      %1093 = vmatprep.mubr.bf16.mxu0 0
      %1094 = vmatmul.mubr.bf16.gmra.mrb[0].mxu0 %v747
      %v1095 = vpop.f32.mrb[0].mxu0
      %v1096 = vadd.f32 %v999, %v1095
      %v1097 = vpop.f32.mrb[0].mxu0
      %v1098 = vpop.f32.mrb[0].mxu0
      %v1099 = vadd.f32 %v1002, %v1098
      %v1100 = vpop.f32.mrb[0].mxu0
      %1101 = vmatprep.mubr.bf16.mxu0 0
      %1102 = vmatmul.mubr.bf16.gmra.mrb[0].mxu0 %v750
      %v1103 = vpop.f32.mrb[0].mxu0
      %v1104 = vadd.f32 %v1007, %v1103
      %v1105 = vpop.f32.mrb[0].mxu0
      %v1106 = vpop.f32.mrb[0].mxu0
      %v1107 = vadd.f32 %v1010, %v1106
      %v1108 = vpop.f32.mrb[0].mxu0
      %1109 = vmatprep.mubr.bf16.mxu0 0
      %1110 = vmatmul.mubr.bf16.gmra.mrb[0].mxu0 %v753
      %v1111 = vpop.f32.mrb[0].mxu0
      %v1112 = vadd.f32 %v1015, %v1111
      %v1113 = vpop.f32.mrb[0].mxu0
      %v1114 = vpop.f32.mrb[0].mxu0
      %v1115 = vadd.f32 %v1018, %v1114
      %v1116 = vpop.f32.mrb[0].mxu0
      %1117 = vmatprep.mubr.bf16.mxu0 0
      %1118 = vmatmul.mubr.bf16.gmra.mrb[0].mxu0 %v756
      %v1119 = vpop.f32.mrb[0].mxu0
      %v1120 = vadd.f32 %v1023, %v1119
      %v1121 = vpop.f32.mrb[0].mxu0
      %v1122 = vpop.f32.mrb[0].mxu0
      %v1123 = vadd.f32 %v1026, %v1122
      %v1124 = vpop.f32.mrb[0].mxu0
      %1125 = vmatprep.mubr.bf16.mxu0 0
      %1126 = vmatmul.mubr.bf16.gmra.mrb[0].mxu0 %v759
      %v1127 = vpop.f32.mrb[0].mxu0
      %v1128 = vadd.f32 %v1031, %v1127
      %v1129 = vpop.f32.mrb[0].mxu0
      %v1130 = vpop.f32.mrb[0].mxu0
      %v1131 = vadd.f32 %v1034, %v1130
      %v1132 = vpop.f32.mrb[0].mxu0
      %1133 = vmatprep.mubr.bf16.mxu0 0
      %1134 = vmatmul.mubr.bf16.gmra.mrb[0].mxu0 %v762
      %v1135 = vpop.f32.mrb[0].mxu0
      %v1136 = vadd.f32 %v1039, %v1135
      %v1137 = vpop.f32.mrb[0].mxu0
      %v1138 = vpop.f32.mrb[0].mxu0
      %v1139 = vadd.f32 %v1042, %v1138
      %v1140 = vpop.f32.mrb[0].mxu0
      %1141 = vmatprep.mubr.bf16.mxu0 0
      %1142 = vmatmul.mubr.bf16.gmra.mrb[0].mxu0 %v765
      %v1143 = vpop.f32.mrb[0].mxu0
      %v1144 = vadd.f32 %v1047, %v1143
      %v1145 = vpop.f32.mrb[0].mxu0
      %v1146 = vpop.f32.mrb[0].mxu0
      %v1147 = vadd.f32 %v1050, %v1146
      %v1148 = vpop.f32.mrb[0].mxu0
      %1149 = vmatprep.mubr.bf16.mxu0 0
      %1150 = vmatmul.mubr.bf16.gmra.mrb[0].mxu0 %v768
      %v1151 = vpop.f32.mrb[0].mxu0
      %v1152 = vadd.f32 %v1055, %v1151
      %v1153 = vpop.f32.mrb[0].mxu0
      %v1154 = vpop.f32.mrb[0].mxu0
      %v1155 = vadd.f32 %v1058, %v1154
      %v1156 = vpop.f32.mrb[0].mxu0
      %1157 = vdwg.mxu0
      %1158 = vst [vmem:[%s175] sm:$0xff] %v1096
      %1159 = vst [vmem:[%s175 + $0x8] sm:$0xff] %v1099
      %1160 = vst [vmem:[%s175 + $0x10] sm:$0xff] %v1104
      %1161 = vst [vmem:[%s175 + $0x18] sm:$0xff] %v1107
      %1162 = vst [vmem:[%s175 + $0x20] sm:$0xff] %v1112
      %1163 = vst [vmem:[%s175 + $0x28] sm:$0xff] %v1115
      %1164 = vst [vmem:[%s175 + $0x30] sm:$0xff] %v1120
      %1165 = vst [vmem:[%s175 + $0x38] sm:$0xff] %v1123
      %1166 = vst [vmem:[%s175 + $0x40] sm:$0xff] %v1128
      %1167 = vst [vmem:[%s175 + $0x48] sm:$0xff] %v1131
      %1168 = vst [vmem:[%s175 + $0x50] sm:$0xff] %v1136
      %1169 = vst [vmem:[%s175 + $0x58] sm:$0xff] %v1139
      %1170 = vst [vmem:[%s175 + $0x60] sm:$0xff] %v1144
      %1171 = vst [vmem:[%s175 + $0x68] sm:$0xff] %v1147
      %1172 = vst [vmem:[%s175 + $0x70] sm:$0xff] %v1152
      %1173 = vst [vmem:[%s175 + $0x78] sm:$0xff] %v1155
      %s1174 = smul.u32 16, %s14
      %p1175 = scmp.lt.s32.totalorder %s1174, 31
      %s1176 = scalar_select %p1175, %s1174, 31
      %s1177 = smul.addr %s1176, 8
      %s1178 = scalar_lea.vmem %s3, %s1177
      // Predicated region
      $region33: #{my_mlp_forward.1} parent=31 // pred_check
        %p1179 = pneg %p100
      $region34: #{my_mlp_forward.1} parent=31 // pred_check_branch
        %1181 = sbr.rel (%p1179) target = $region36
      $region35: #{my_mlp_forward.1} parent=31 // pred_region
        %s1182 = smul.u32 16, %s14
      $region36: #{my_mlp_forward.1} parent=31 // pred_fallthru
        _
    $region32: #{my_mlp_forward.1} parent=5 // pred_fallthru
      _
    %p1183 = scmp.le.s32.totalorder 2, %s9
    // Predicated region
    $region37: #{my_mlp_forward.1} parent=5 // pred_check
      %p1184 = pneg %p1183
    $region38: #{my_mlp_forward.1} parent=5 // pred_check_branch
      %1186 = sbr.rel (%p1184) target = $region40
    $region39: #{my_mlp_forward.1} parent=5 // pred_region
      %s1187 = ssub.s32 %s9, 2
      // Predicated region
      $region41: #{my_mlp_forward.1} parent=39 // pred_check
        %p1188 = pneg %p106
      $region42: #{my_mlp_forward.1} parent=39 // pred_check_branch
        %1190 = sbr.rel (%p1188) target = $region44
      $region43: #{my_mlp_forward.1} parent=39 // pred_region
        %s1191 = smul.u32 16, %s15
        %p1192 = scmp.lt.s32.totalorder %s1191, 31
        %s1193 = scalar_select %p1192, %s1191, 31
        %s1194 = smul.addr %s1193, 8
        %s1195 = scalar_lea.vmem %s3, %s1194
      $region44: #{my_mlp_forward.1} parent=39 // pred_fallthru
        _
    $region40: #{my_mlp_forward.1} parent=5 // pred_fallthru
      _
  $region6: #{my_mlp_forward.1} parent=0 // loop_footer
    %s13 = sadd.s32 1, %s9
  $region7: #{my_mlp_forward.1} parent=0 // loop_footer_branch
    %8 = sbr.rel target = $region3
  $region8: #{my_mlp_forward.1} parent=0 // loop_exit
    _

</llo_original>
